<compile_context>
chip_gen: v5e
topology: v5e:2x2
jax: 0.10.0
libtpu: 0.0.40
codegen_flags: <defaults>
</compile_context>

<pallas_src>
import math

import jax
import jax.numpy as jnp
from jax.experimental import pallas as pl
from jax.experimental.pallas import tpu as pltpu


def _round_up(x, m):
    return ((x + m - 1) // m) * m


def _cdiv(a, b):
    return -(-a // b)


def _linear_kernel(x_ref, w_ref, b_ref, o_ref):
    """One (shard, k) step of logits = x @ W + b.

    x_ref: [Bp, TK]    compute dtype (bf16)
    w_ref: [TK, Cp]    compute dtype (bf16)
    b_ref: [1, Cp]     f32
    o_ref: [1, Bp, Cp] f32 — per-shard partial output, VMEM-resident across k.
    """
    s = pl.program_id(0)
    k = pl.program_id(1)

    @pl.when(k == 0)
    def _init():
        # Fold the bias into shard 0's accumulator; other shards start at 0.
        first = (s == 0).astype(jnp.float32)
        o_ref[...] = jnp.broadcast_to(b_ref[...] * first, o_ref.shape)

    o_ref[...] += jnp.dot(
        x_ref[...], w_ref[...], preferred_element_type=jnp.float32
    )[None]


def _plan(D, num_classes, batch, *, tk, compute_dtype, num_shards):
    """Static tiling plan (all Python ints)."""
    itemsize = jnp.dtype(compute_dtype).itemsize
    sub = 16 if itemsize == 2 else 8              # sublane multiple
    Bp = _round_up(max(batch, sub), sub)
    Cp = _round_up(num_classes, 128)              # lane-dense output columns

    # Cap the K tile so double-buffered x+w tiles stay within a conservative
    # VMEM budget (plenty of headroom under v7x's 64 MiB physical VMEM).
    budget = 24 << 20
    max_tk = max(512, (budget // (2 * (Bp + Cp) * itemsize)) // 128 * 128)
    tk_eff = max(128, min(tk, max_tk))

    # Spread K padding: pick the tile count first, then the smallest
    # 128-multiple tile that covers D.
    num_k = max(1, _cdiv(D, tk_eff))
    if num_shards is None:
        shards = 2 if num_k >= 2 else 1           # use both TCs on v7x
    else:
        shards = max(1, min(int(num_shards), num_k))
    num_k = _round_up(num_k, shards)
    TK = _round_up(_cdiv(D, num_k), 128)
    Dp = num_k * TK
    kps = num_k // shards                         # K tiles per shard

    return dict(Bp=Bp, Cp=Cp, TK=TK, Dp=Dp, num_k=num_k, kps=kps,
                shards=shards, itemsize=itemsize)


def _pallas_linear(x_p, w_p, b_p, plan):
    Bp, Cp, TK, Dp = plan["Bp"], plan["Cp"], plan["TK"], plan["Dp"]
    kps, shards, itemsize = plan["kps"], plan["shards"], plan["itemsize"]

    vmem_bytes = (2 * (Bp * TK + TK * Cp) * itemsize   # double-buffered x/w
                  + 2 * Cp * 4                          # bias
                  + 2 * Bp * Cp * 4)                    # output block
    # Clamp well under v7x's 64 MiB physical VMEM.
    vmem_limit = min(max(vmem_bytes + (4 << 20), 16 << 20), 48 << 20)

    cost = pl.CostEstimate(
        flops=2 * Bp * Dp * Cp,
        transcendentals=0,
        bytes_accessed=(Bp * Dp + Dp * Cp) * itemsize + Cp * 4
        + shards * Bp * Cp * 4,
    )

    partial_out = pl.pallas_call(
        _linear_kernel,
        out_shape=jax.ShapeDtypeStruct((shards, Bp, Cp), jnp.float32),
        grid_spec=pltpu.PrefetchScalarGridSpec(
            num_scalar_prefetch=0,
            grid=(shards, kps),
            in_specs=[
                pl.BlockSpec((Bp, TK), lambda s, k: (0, s * kps + k)),
                pl.BlockSpec((TK, Cp), lambda s, k: (s * kps + k, 0)),
                pl.BlockSpec((1, Cp), lambda s, k: (0, 0)),
            ],
            out_specs=pl.BlockSpec((1, Bp, Cp), lambda s, k: (s, 0, 0)),
        ),
        compiler_params=pltpu.CompilerParams(
            dimension_semantics=("parallel", "arbitrary"),
            vmem_limit_bytes=vmem_limit,
        ),
        cost_estimate=cost,
    )(x_p, w_p, b_p)

    # Combine per-TensorCore partial sums (trivial when shards == 1).
    return jnp.sum(partial_out, axis=0)


class AlgorithmPredictor:
    """Concrete realization of `Algorithm.forward`: flatten -> Linear.

    The padded/cast weight and bias are built once at construction and reused
    on every call (the kernel is HBM weight-stream bound, so re-padding the
    weight per call would roughly quadruple total HBM traffic).
    """

    def __init__(self, input_shape, num_classes, weight, bias, *,
                 tk=4096, compute_dtype=jnp.bfloat16, num_shards=None):
        self.input_shape = tuple(input_shape)
        self.num_classes = int(num_classes)
        self.D = int(math.prod(self.input_shape))
        self.compute_dtype = compute_dtype
        self._tk = int(tk)
        self._num_shards = num_shards
        self._w = jnp.asarray(weight)       # [D, num_classes], f32
        self._b = jnp.asarray(bias)         # [num_classes],    f32
        self._padded = {}                   # (Dp, Cp) -> (w_p, b_p)
        self._compiled = {}                 # batch -> (jitted fn, w_p, b_p)

    def _get_padded(self, Dp, Cp):
        key = (Dp, Cp)
        if key not in self._padded:
            w_p = (jnp.zeros((Dp, Cp), self.compute_dtype)
                   .at[:self.D, :self.num_classes]
                   .set(self._w.astype(self.compute_dtype)))
            b_p = (jnp.zeros((1, Cp), jnp.float32)
                   .at[0, :self.num_classes]
                   .set(self._b.astype(jnp.float32)))
            self._padded[key] = (jax.device_put(w_p), jax.device_put(b_p))
        return self._padded[key]

    def __call__(self, x):
        B = int(x.shape[0])
        if B not in self._compiled:
            plan = _plan(self.D, self.num_classes, B, tk=self._tk,
                         compute_dtype=self.compute_dtype,
                         num_shards=self._num_shards)
            w_p, b_p = self._get_padded(plan["Dp"], plan["Cp"])
            D, C, dtype = self.D, self.num_classes, self.compute_dtype

            def predict(x, w_p, b_p):
                x_flat = x.reshape(B, D).astype(dtype)
                x_p = (jnp.zeros((plan["Bp"], plan["Dp"]), dtype)
                       .at[:B, :D].set(x_flat))
                out = _pallas_linear(x_p, w_p, b_p, plan)
                return out[:B, :C]

            self._compiled[B] = (jax.jit(predict), w_p, b_p)

        fn, w_p, b_p = self._compiled[B]
        return fn(x, w_p, b_p)


def algorithm_predict(x_nchw, weight, bias, *, tk=4096,
                      compute_dtype=jnp.bfloat16, num_shards=None):
    """One-shot convenience wrapper: logits = flatten(x) @ weight + bias."""
    model = AlgorithmPredictor(x_nchw.shape[1:], weight.shape[1], weight, bias,
                               tk=tk, compute_dtype=compute_dtype,
                               num_shards=num_shards)
    return model(x_nchw)


if __name__ == "__main__":
    # Small shapes consistent with the module: input_shape=(4,16,16), batch=2.
    key = jax.random.PRNGKey(0)
    kx, kw, kb = jax.random.split(key, 3)

    batch = 2
    input_shape = (4, 16, 16)       # (C, H, W)
    num_classes = 8
    D = input_shape[0] * input_shape[1] * input_shape[2]

    x = jax.random.normal(kx, (batch,) + input_shape, dtype=jnp.float32)
    # Deterministic synthetic parameters (nn.Linear-like init).
    bound = 1.0 / (D ** 0.5)
    weight = jax.random.uniform(kw, (D, num_classes),
                                minval=-bound, maxval=bound,
                                dtype=jnp.float32)
    bias = jax.random.uniform(kb, (num_classes,),
                              minval=-bound, maxval=bound,
                              dtype=jnp.float32)

    model = AlgorithmPredictor(input_shape, num_classes, weight, bias)
    logits = model(x)
    jax.block_until_ready(logits)

    # Second call exercises the cached (no re-pad / no re-cast) hot path.
    logits2 = model(x)
    jax.block_until_ready(logits2)

    # Sanity check vs plain-JAX references.
    x_flat = x.reshape(batch, D)
    ref_f32 = x_flat @ weight + bias
    # bf16-matched reference (same operand precision as the kernel).
    ref_bf16 = (x_flat.astype(jnp.bfloat16).astype(jnp.float32)
                @ weight.astype(jnp.bfloat16).astype(jnp.float32)) + bias

    assert logits.shape == (batch, num_classes)
    assert jnp.allclose(logits, ref_bf16, atol=1e-3, rtol=1e-3)
    assert jnp.allclose(logits, ref_f32, atol=2e-2, rtol=2e-2)
    assert jnp.allclose(logits, logits2)

    print("KERNEL_OK")
</pallas_src>

<mosaic_0001>
module attributes {stable_mosaic.version = 11 : i64} {
  func.func @_linear_kernel(%arg0: i32, %arg1: i32, %arg2: memref<16x1024xbf16, #tpu.memory_space<vmem>>, %arg3: memref<1024x128xbf16, #tpu.memory_space<vmem>>, %arg4: memref<1x128xf32, #tpu.memory_space<vmem>>, %arg5: memref<1x16x128xf32, #tpu.memory_space<vmem>>) attributes {dimension_semantics = [#tpu.dimension_semantics<parallel>, #tpu.dimension_semantics<arbitrary>], iteration_bounds = array<i64: 1, 1>, scalar_prefetch = 0 : i64, scratch_operands = 0 : i64, tpu.core_type = #tpu.core_type<tc>, window_params = [{transform_indices = @transform_0, window_bounds = array<i64: 16, 1024>}, {transform_indices = @transform_1, window_bounds = array<i64: 1024, 128>}, {pipeline_mode = #tpu.pipeline_mode<synchronous>, transform_indices = @transform_2, window_bounds = array<i64: 1, 128>}, {transform_indices = @transform_3, window_bounds = array<i64: 1, 16, 128>}]} {
    %c0_i32 = arith.constant 0 : i32
    %0 = arith.cmpi eq, %arg1, %c0_i32 : i32
    %1 = arith.extui %0 : i1 to i32
    %c0_i32_0 = arith.constant 0 : i32
    %2 = arith.cmpi ne, %1, %c0_i32_0 : i32
    scf.if %2 {
      %c0_i32_10 = arith.constant 0 : i32
      %10 = arith.cmpi eq, %arg0, %c0_i32_10 : i32
      %11 = arith.extui %10 : i1 to i32
      %12 = arith.sitofp %11 : i32 to f32
      %c0_11 = arith.constant 0 : index
      %c0_12 = arith.constant 0 : index
      %13 = vector.load %arg4[%c0_11, %c0_12] : memref<1x128xf32, #tpu.memory_space<vmem>>, vector<1x128xf32>
      %14 = vector.broadcast %12 : f32 to vector<1x128xf32>
      %15 = arith.mulf %13, %14 : vector<1x128xf32>
      %16 = vector.shape_cast %15 : vector<1x128xf32> to vector<1x1x128xf32>
      %17 = vector.broadcast %16 : vector<1x1x128xf32> to vector<1x16x128xf32>
      %c0_13 = arith.constant 0 : index
      %c0_14 = arith.constant 0 : index
      %c0_15 = arith.constant 0 : index
      %18 = vector.load %arg5[%c0_13, %c0_14, %c0_15] : memref<1x16x128xf32, #tpu.memory_space<vmem>>, vector<1x16x128xf32>
      tpu.vector_store %arg5[%c0_13, %c0_14, %c0_15], %17 {strides = array<i32>} : memref<1x16x128xf32, #tpu.memory_space<vmem>>, vector<1x16x128xf32>,
    } else {
    }
    %c0 = arith.constant 0 : index
    %c0_1 = arith.constant 0 : index
    %c0_2 = arith.constant 0 : index
    %3 = vector.load %arg5[%c0, %c0_1, %c0_2] : memref<1x16x128xf32, #tpu.memory_space<vmem>>, vector<1x16x128xf32>
    %c0_3 = arith.constant 0 : index
    %c0_4 = arith.constant 0 : index
    %4 = vector.load %arg2[%c0_3, %c0_4] : memref<16x1024xbf16, #tpu.memory_space<vmem>>, vector<16x1024xbf16>
    %c0_5 = arith.constant 0 : index
    %c0_6 = arith.constant 0 : index
    %5 = vector.load %arg3[%c0_5, %c0_6] : memref<1024x128xbf16, #tpu.memory_space<vmem>>, vector<1024x128xbf16>
    %cst = arith.constant dense<0.000000e+00> : vector<16x128xf32>
    %6 = tpu.matmul %4, %5, %cst {dimension_numbers = #tpu.dot_dimension_numbers<[1], [0], [0], [1], [0, 0, 1, 1], [], []>} : vector<16x1024xbf16>, vector<1024x128xbf16>, vector<16x128xf32> -> vector<16x128xf32>
    %7 = vector.shape_cast %6 : vector<16x128xf32> to vector<1x16x128xf32>
    %8 = arith.addf %3, %7 : vector<1x16x128xf32>
    %c0_7 = arith.constant 0 : index
    %c0_8 = arith.constant 0 : index
    %c0_9 = arith.constant 0 : index
    %9 = vector.load %arg5[%c0_7, %c0_8, %c0_9] : memref<1x16x128xf32, #tpu.memory_space<vmem>>, vector<1x16x128xf32>
    tpu.vector_store %arg5[%c0_7, %c0_8, %c0_9], %8 {strides = array<i32>} : memref<1x16x128xf32, #tpu.memory_space<vmem>>, vector<1x16x128xf32>,
    return
  }
  func.func @transform_0(%arg0: i32, %arg1: i32) -> (i32, i32) {
    %c1_i32 = arith.constant 1 : i32
    %0 = arith.muli %arg0, %c1_i32 : i32
    %1 = arith.addi %0, %arg1 : i32
    %c0_i32 = arith.constant 0 : i32
    %c0_i32_0 = arith.constant 0 : i32
    return %c0_i32, %1 : i32, i32
  }
  func.func @transform_1(%arg0: i32, %arg1: i32) -> (i32, i32) {
    %c1_i32 = arith.constant 1 : i32
    %0 = arith.muli %arg0, %c1_i32 : i32
    %1 = arith.addi %0, %arg1 : i32
    %c0_i32 = arith.constant 0 : i32
    %c0_i32_0 = arith.constant 0 : i32
    return %1, %c0_i32 : i32, i32
  }
  func.func @transform_2(%arg0: i32, %arg1: i32) -> (i32, i32) {
    %c0_i32 = arith.constant 0 : i32
    %c0_i32_0 = arith.constant 0 : i32
    %c0_i32_1 = arith.constant 0 : i32
    return %c0_i32, %c0_i32_0 : i32, i32
  }
  func.func @transform_3(%arg0: i32, %arg1: i32) -> (i32, i32, i32) {
    %c0_i32 = arith.constant 0 : i32
    %c0_i32_0 = arith.constant 0 : i32
    %c0_i32_1 = arith.constant 0 : i32
    return %arg0, %c0_i32, %c0_i32_0 : i32, i32, i32
  }
}

</mosaic_0001>

<llo_original>
// kernel: predict.1
$region0: #{predict.1}
  #allocation0 [shape = 'u32[]', space=smem, size = 0x4, offset = 0x4, fixed_abs, tag = 'smem constant byte address 0x4 - core index']
  #allocation1 [shape = 'u32[72,128]{1,0:T(1,128)}', space=vmem, size = 0x9000, scoped, tag = 'internal scratch']
  %s0 = inlined_call_operand.vmem [shape: bf16[16,1024], index: 0, kind: input, shape index: {}]
  %s1 = inlined_call_operand.hbm [shape: bf16[1024,128], index: 1, kind: input, shape index: {}]
  %s2 = inlined_call_operand.vmem [shape: f32[1,128], index: 2, kind: input, shape index: {}]
  %s3 = inlined_call_operand.vmem [shape: f32[1,16,128], index: 3, kind: output, shape index: {}]
  %s4 = sld [smem:[#allocation0]]
  $region30: #{predict.1} parent=0
    _
  %s6 = ssub.s32 1, %s4
  %s7 = scalar_select 0, %s6, %s4
  $region1: #{predict.1} parent=0
    #allocation2 [shape = 'u8[262144]{0}', space=vmem, size = 0x40000, scoped, tag = 'input window, operand 1, single buffered']
    #allocation3 [shape = 's32[1]{0}', space=sflag, size = 0x4, scoped, tag = 'scoped memory for predict.1']
    %8 = vsyncpa [#allocation3], 0
    // Predicated region
    $region2: #{predict.1} parent=1 // pred_check
      _
    $region3: #{predict.1} parent=1 // pred_check_branch
      %10 = sbr.rel (0) target = $region5
    $region4: #{predict.1} parent=1 // pred_region
      %s11 = sadd.s32 0, 0
      %s12 = smul.u32 8, %s11
      %p13 = scmp.lt.s32.totalorder %s12, 7
      %s14 = scalar_select %p13, %s12, 7
      %s15 = smul.addr %s14, 4
      %s16 = scalar_lea.vmem %s0, %s15
      %s17 = sadd.s32 0, 0
      %s18 = smul.u32 8, %s17
    $region5: #{predict.1} parent=1 // pred_fallthru
      _
    // Predicated region
    $region6: #{predict.1} parent=1 // pred_check
      _
    $region7: #{predict.1} parent=1 // pred_check_branch
      %20 = sbr.rel (0) target = $region9
    $region8: #{predict.1} parent=1 // pred_region
      %s21 = sadd.s32 0, 0
      %s22 = smul.u32 128, %s21
      %24 = vsyncadd [#allocation3], 0
      %s25 = smul.addr %s22, 4
      %s26 = scalar_lea.hbm %s1, %s25
      %s27 = sshll.u32 %s26, 4
      %s28 = int_to_ptr.hbm [resolvable:$true] %s27
      %s29 = sshll.u32 [#allocation2], 4
      %s30 = int_to_ptr.vmem [resolvable:$true] %s29
      %35 = dma.hbm_to_vmem [thread:$0]  %s28, 8192, %s30, [#allocation3], 64, 64, 4
    $region9: #{predict.1} parent=1 // pred_fallthru
      _
    // Predicated region
    $region10: #{predict.1} parent=1 // pred_check
      _
    $region11: #{predict.1} parent=1 // pred_check_branch
      %37 = sbr.rel (0) target = $region13
    $region12: #{predict.1} parent=1 // pred_region
      _
    $region13: #{predict.1} parent=1 // pred_fallthru
      _
    // Predicated region
    $region14: #{predict.1} parent=1 // pred_check
      _
    $region15: #{predict.1} parent=1 // pred_check_branch
      %39 = sbr.rel (0) target = $region17
    $region16: #{predict.1} parent=1 // pred_region
      %41 = dma.done [#allocation3], 8192
    $region17: #{predict.1} parent=1 // pred_fallthru
      _
    %s42 = sadd.s32 0, 0
    %s43 = smul.u32 8, %s42
    %p44 = scmp.lt.s32.totalorder %s43, 7
    %s45 = scalar_select %p44, %s43, 7
    %s46 = smul.addr %s45, 4
    %s47 = scalar_lea.vmem %s0, %s46
    %s48 = sadd.s32 0, 0
    %s49 = smul.u32 8, %s48
    %p50 = scmp.lt.s32.totalorder %s49, 7
    %s51 = scalar_select %p50, %s49, 7
    %s52 = smul.addr %s51, 4
    %s53 = scalar_lea.vmem %s0, %s52
    %s54 = sadd.s32 0, 0
    %s55 = smul.u32 8, %s54
    %s56 = sadd.s32 0, 0
    %s57 = smul.u32 128, %s56
    %p58 = scmp.eq.s32.totalorder 0, 0
    // Predicated region
    $region18: #{predict.1} parent=1 // pred_check
      %p59 = pneg %p58
    $region19: #{predict.1} parent=1 // pred_check_branch
      %61 = sbr.rel (%p59) target = $region21
    $region20: #{predict.1} parent=1 // pred_region
      %p62 = scmp.eq.s32.totalorder 0, 0
      %s63 = scalar_select %p62, 1, 0
      %s64 = scvt.s32.f32 %s63
      %v65 = vld [vmem:[%s2] sm:$0x1]
      %v66 = vstv %s64
      %v67 = vmul.f32 %v65, %v66
      %v69 = vperm.slane %v67, 0
      %71 = vst [vmem:[%s3] sm:$0xff] %v69
      %72 = vst [vmem:[%s3 + $0x8] sm:$0xff] %v69
    $region21: #{predict.1} parent=1 // pred_fallthru
      _
    %v73 = vld [vmem:[%s3] sm:$0xff]
    %v74 = vld [vmem:[%s3 + $0x8] sm:$0xff]
    %v75 = vld [vmem:[%s53] sm:$0xff]
    %v76 = vld [vmem:[%s53 + $0x8] sm:$0xff]
    %v77 = vld [vmem:[%s53 + $0x10] sm:$0xff]
    %v78 = vld [vmem:[%s53 + $0x18] sm:$0xff]
    %v79 = vld [vmem:[%s53 + $0x20] sm:$0xff]
    %v80 = vld [vmem:[%s53 + $0x28] sm:$0xff]
    %v81 = vld [vmem:[%s53 + $0x30] sm:$0xff]
    %v82 = vld [vmem:[%s53 + $0x38] sm:$0xff]
    %v83 = vld [vmem:[#allocation2] sm:$0xf]
    %v84 = vld [vmem:[#allocation2 + $0x4] sm:$0xf]
    %v85 = vld [vmem:[#allocation2 + $0x8] sm:$0xf]
    %v86 = vld [vmem:[#allocation2 + $0xc] sm:$0xf]
    %v87 = vld [vmem:[#allocation2 + $0x10] sm:$0xf]
    %v88 = vld [vmem:[#allocation2 + $0x14] sm:$0xf]
    %v89 = vld [vmem:[#allocation2 + $0x18] sm:$0xf]
    %v90 = vld [vmem:[#allocation2 + $0x1c] sm:$0xf]
    %v91 = vld [vmem:[#allocation2 + $0x20] sm:$0xf]
    %v92 = vld [vmem:[#allocation2 + $0x24] sm:$0xf]
    %v93 = vld [vmem:[#allocation2 + $0x28] sm:$0xf]
    %v94 = vld [vmem:[#allocation2 + $0x2c] sm:$0xf]
    %v95 = vld [vmem:[#allocation2 + $0x30] sm:$0xf]
    %v96 = vld [vmem:[#allocation2 + $0x34] sm:$0xf]
    %v97 = vld [vmem:[#allocation2 + $0x38] sm:$0xf]
    %v98 = vld [vmem:[#allocation2 + $0x3c] sm:$0xf]
    %v99 = vld [vmem:[#allocation2 + $0x40] sm:$0xf]
    %v100 = vld [vmem:[#allocation2 + $0x44] sm:$0xf]
    %v101 = vld [vmem:[#allocation2 + $0x48] sm:$0xf]
    %v102 = vld [vmem:[#allocation2 + $0x4c] sm:$0xf]
    %v103 = vld [vmem:[#allocation2 + $0x50] sm:$0xf]
    %v104 = vld [vmem:[#allocation2 + $0x54] sm:$0xf]
    %v105 = vld [vmem:[#allocation2 + $0x58] sm:$0xf]
    %v106 = vld [vmem:[#allocation2 + $0x5c] sm:$0xf]
    %v107 = vld [vmem:[#allocation2 + $0x60] sm:$0xf]
    %v108 = vld [vmem:[#allocation2 + $0x64] sm:$0xf]
    %v109 = vld [vmem:[#allocation2 + $0x68] sm:$0xf]
    %v110 = vld [vmem:[#allocation2 + $0x6c] sm:$0xf]
    %v111 = vld [vmem:[#allocation2 + $0x70] sm:$0xf]
    %v112 = vld [vmem:[#allocation2 + $0x74] sm:$0xf]
    %v113 = vld [vmem:[#allocation2 + $0x78] sm:$0xf]
    %v114 = vld [vmem:[#allocation2 + $0x7c] sm:$0xf]
    %v115 = vld [vmem:[#allocation2 + $0x80] sm:$0xf]
    %v116 = vld [vmem:[#allocation2 + $0x84] sm:$0xf]
    %v117 = vld [vmem:[#allocation2 + $0x88] sm:$0xf]
    %v118 = vld [vmem:[#allocation2 + $0x8c] sm:$0xf]
    %v119 = vld [vmem:[#allocation2 + $0x90] sm:$0xf]
    %v120 = vld [vmem:[#allocation2 + $0x94] sm:$0xf]
    %v121 = vld [vmem:[#allocation2 + $0x98] sm:$0xf]
    %v122 = vld [vmem:[#allocation2 + $0x9c] sm:$0xf]
    %v123 = vld [vmem:[#allocation2 + $0xa0] sm:$0xf]
    %v124 = vld [vmem:[#allocation2 + $0xa4] sm:$0xf]
    %v125 = vld [vmem:[#allocation2 + $0xa8] sm:$0xf]
    %v126 = vld [vmem:[#allocation2 + $0xac] sm:$0xf]
    %v127 = vld [vmem:[#allocation2 + $0xb0] sm:$0xf]
    %v128 = vld [vmem:[#allocation2 + $0xb4] sm:$0xf]
    %v129 = vld [vmem:[#allocation2 + $0xb8] sm:$0xf]
    %v130 = vld [vmem:[#allocation2 + $0xbc] sm:$0xf]
    %v131 = vld [vmem:[#allocation2 + $0xc0] sm:$0xf]
    %v132 = vld [vmem:[#allocation2 + $0xc4] sm:$0xf]
    %v133 = vld [vmem:[#allocation2 + $0xc8] sm:$0xf]
    %v134 = vld [vmem:[#allocation2 + $0xcc] sm:$0xf]
    %v135 = vld [vmem:[#allocation2 + $0xd0] sm:$0xf]
    %v136 = vld [vmem:[#allocation2 + $0xd4] sm:$0xf]
    %v137 = vld [vmem:[#allocation2 + $0xd8] sm:$0xf]
    %v138 = vld [vmem:[#allocation2 + $0xdc] sm:$0xf]
    %v139 = vld [vmem:[#allocation2 + $0xe0] sm:$0xf]
    %v140 = vld [vmem:[#allocation2 + $0xe4] sm:$0xf]
    %v141 = vld [vmem:[#allocation2 + $0xe8] sm:$0xf]
    %v142 = vld [vmem:[#allocation2 + $0xec] sm:$0xf]
    %v143 = vld [vmem:[#allocation2 + $0xf0] sm:$0xf]
    %v144 = vld [vmem:[#allocation2 + $0xf4] sm:$0xf]
    %v145 = vld [vmem:[#allocation2 + $0xf8] sm:$0xf]
    %v146 = vld [vmem:[#allocation2 + $0xfc] sm:$0xf]
    %v147 = vld [vmem:[#allocation2 + $0x100] sm:$0xf]
    %v148 = vld [vmem:[#allocation2 + $0x104] sm:$0xf]
    %v149 = vld [vmem:[#allocation2 + $0x108] sm:$0xf]
    %v150 = vld [vmem:[#allocation2 + $0x10c] sm:$0xf]
    %v151 = vld [vmem:[#allocation2 + $0x110] sm:$0xf]
    %v152 = vld [vmem:[#allocation2 + $0x114] sm:$0xf]
    %v153 = vld [vmem:[#allocation2 + $0x118] sm:$0xf]
    %v154 = vld [vmem:[#allocation2 + $0x11c] sm:$0xf]
    %v155 = vld [vmem:[#allocation2 + $0x120] sm:$0xf]
    %v156 = vld [vmem:[#allocation2 + $0x124] sm:$0xf]
    %v157 = vld [vmem:[#allocation2 + $0x128] sm:$0xf]
    %v158 = vld [vmem:[#allocation2 + $0x12c] sm:$0xf]
    %v159 = vld [vmem:[#allocation2 + $0x130] sm:$0xf]
    %v160 = vld [vmem:[#allocation2 + $0x134] sm:$0xf]
    %v161 = vld [vmem:[#allocation2 + $0x138] sm:$0xf]
    %v162 = vld [vmem:[#allocation2 + $0x13c] sm:$0xf]
    %v163 = vld [vmem:[#allocation2 + $0x140] sm:$0xf]
    %v164 = vld [vmem:[#allocation2 + $0x144] sm:$0xf]
    %v165 = vld [vmem:[#allocation2 + $0x148] sm:$0xf]
    %v166 = vld [vmem:[#allocation2 + $0x14c] sm:$0xf]
    %v167 = vld [vmem:[#allocation2 + $0x150] sm:$0xf]
    %v168 = vld [vmem:[#allocation2 + $0x154] sm:$0xf]
    %v169 = vld [vmem:[#allocation2 + $0x158] sm:$0xf]
    %v170 = vld [vmem:[#allocation2 + $0x15c] sm:$0xf]
    %v171 = vld [vmem:[#allocation2 + $0x160] sm:$0xf]
    %v172 = vld [vmem:[#allocation2 + $0x164] sm:$0xf]
    %v173 = vld [vmem:[#allocation2 + $0x168] sm:$0xf]
    %v174 = vld [vmem:[#allocation2 + $0x16c] sm:$0xf]
    %v175 = vld [vmem:[#allocation2 + $0x170] sm:$0xf]
    %v176 = vld [vmem:[#allocation2 + $0x174] sm:$0xf]
    %v177 = vld [vmem:[#allocation2 + $0x178] sm:$0xf]
    %v178 = vld [vmem:[#allocation2 + $0x17c] sm:$0xf]
    %v179 = vld [vmem:[#allocation2 + $0x180] sm:$0xf]
    %v180 = vld [vmem:[#allocation2 + $0x184] sm:$0xf]
    %v181 = vld [vmem:[#allocation2 + $0x188] sm:$0xf]
    %v182 = vld [vmem:[#allocation2 + $0x18c] sm:$0xf]
    %v183 = vld [vmem:[#allocation2 + $0x190] sm:$0xf]
    %v184 = vld [vmem:[#allocation2 + $0x194] sm:$0xf]
    %v185 = vld [vmem:[#allocation2 + $0x198] sm:$0xf]
    %v186 = vld [vmem:[#allocation2 + $0x19c] sm:$0xf]
    %v187 = vld [vmem:[#allocation2 + $0x1a0] sm:$0xf]
    %v188 = vld [vmem:[#allocation2 + $0x1a4] sm:$0xf]
    %v189 = vld [vmem:[#allocation2 + $0x1a8] sm:$0xf]
    %v190 = vld [vmem:[#allocation2 + $0x1ac] sm:$0xf]
    %v191 = vld [vmem:[#allocation2 + $0x1b0] sm:$0xf]
    %v192 = vld [vmem:[#allocation2 + $0x1b4] sm:$0xf]
    %v193 = vld [vmem:[#allocation2 + $0x1b8] sm:$0xf]
    %v194 = vld [vmem:[#allocation2 + $0x1bc] sm:$0xf]
    %v195 = vld [vmem:[#allocation2 + $0x1c0] sm:$0xf]
    %v196 = vld [vmem:[#allocation2 + $0x1c4] sm:$0xf]
    %v197 = vld [vmem:[#allocation2 + $0x1c8] sm:$0xf]
    %v198 = vld [vmem:[#allocation2 + $0x1cc] sm:$0xf]
    %v199 = vld [vmem:[#allocation2 + $0x1d0] sm:$0xf]
    %v200 = vld [vmem:[#allocation2 + $0x1d4] sm:$0xf]
    %v201 = vld [vmem:[#allocation2 + $0x1d8] sm:$0xf]
    %v202 = vld [vmem:[#allocation2 + $0x1dc] sm:$0xf]
    %v203 = vld [vmem:[#allocation2 + $0x1e0] sm:$0xf]
    %v204 = vld [vmem:[#allocation2 + $0x1e4] sm:$0xf]
    %v205 = vld [vmem:[#allocation2 + $0x1e8] sm:$0xf]
    %v206 = vld [vmem:[#allocation2 + $0x1ec] sm:$0xf]
    %v207 = vld [vmem:[#allocation2 + $0x1f0] sm:$0xf]
    %v208 = vld [vmem:[#allocation2 + $0x1f4] sm:$0xf]
    %v209 = vld [vmem:[#allocation2 + $0x1f8] sm:$0xf]
    %v210 = vld [vmem:[#allocation2 + $0x1fc] sm:$0xf]
    %v219 = vunpack.c.l.b16 %v75
    %v220 = vunpack.c.h.b16 %v75
    %v221 = vunpack.c.l.b16 %v76
    %v222 = vunpack.c.h.b16 %v76
    %v223 = vunpack.c.l.b16 %v77
    %v224 = vunpack.c.h.b16 %v77
    %v225 = vunpack.c.l.b16 %v78
    %v226 = vunpack.c.h.b16 %v78
    %v227 = vunpack.c.l.b16 %v79
    %v228 = vunpack.c.h.b16 %v79
    %v229 = vunpack.c.l.b16 %v80
    %v230 = vunpack.c.h.b16 %v80
    %v231 = vunpack.c.l.b16 %v81
    %v232 = vunpack.c.h.b16 %v81
    %v233 = vunpack.c.l.b16 %v82
    %v234 = vunpack.c.h.b16 %v82
    %v235 = vpack.c.b16 %v227, %v219
    %v236 = vpack.c.b16 %v228, %v220
    %v237 = vpack.c.b16 %v229, %v221
    %v238 = vpack.c.b16 %v230, %v222
    %v239 = vpack.c.b16 %v231, %v223
    %v240 = vpack.c.b16 %v232, %v224
    %v241 = vpack.c.b16 %v233, %v225
    %v242 = vpack.c.b16 %v234, %v226
    %v379 = vunpack.c.l.b16 %v83
    %v380 = vunpack.c.l.b16 %v84
    %v381 = vunpack.c.l.b16 %v85
    %v382 = vunpack.c.l.b16 %v86
    %v383 = vunpack.c.l.b16 %v87
    %v384 = vunpack.c.l.b16 %v88
    %v385 = vunpack.c.l.b16 %v89
    %v386 = vunpack.c.l.b16 %v90
    %v387 = vunpack.c.l.b16 %v91
    %v388 = vunpack.c.l.b16 %v92
    %v389 = vunpack.c.l.b16 %v93
    %v390 = vunpack.c.l.b16 %v94
    %v391 = vunpack.c.l.b16 %v95
    %v392 = vunpack.c.l.b16 %v96
    %v393 = vunpack.c.l.b16 %v97
    %v394 = vunpack.c.l.b16 %v98
    %v395 = vunpack.c.l.b16 %v99
    %v396 = vunpack.c.l.b16 %v100
    %v397 = vunpack.c.l.b16 %v101
    %v398 = vunpack.c.l.b16 %v102
    %v399 = vunpack.c.l.b16 %v103
    %v400 = vunpack.c.l.b16 %v104
    %v401 = vunpack.c.l.b16 %v105
    %v402 = vunpack.c.l.b16 %v106
    %v403 = vunpack.c.l.b16 %v107
    %v404 = vunpack.c.l.b16 %v108
    %v405 = vunpack.c.l.b16 %v109
    %v406 = vunpack.c.l.b16 %v110
    %v407 = vunpack.c.l.b16 %v111
    %v408 = vunpack.c.l.b16 %v112
    %v409 = vunpack.c.l.b16 %v113
    %v410 = vunpack.c.l.b16 %v114
    %v411 = vunpack.c.l.b16 %v115
    %v412 = vunpack.c.l.b16 %v116
    %v413 = vunpack.c.l.b16 %v117
    %v414 = vunpack.c.l.b16 %v118
    %v415 = vunpack.c.l.b16 %v119
    %v416 = vunpack.c.l.b16 %v120
    %v417 = vunpack.c.l.b16 %v121
    %v418 = vunpack.c.l.b16 %v122
    %v419 = vunpack.c.l.b16 %v123
    %v420 = vunpack.c.l.b16 %v124
    %v421 = vunpack.c.l.b16 %v125
    %v422 = vunpack.c.l.b16 %v126
    %v423 = vunpack.c.l.b16 %v127
    %v424 = vunpack.c.l.b16 %v128
    %v425 = vunpack.c.l.b16 %v129
    %v426 = vunpack.c.l.b16 %v130
    %v427 = vunpack.c.l.b16 %v131
    %v428 = vunpack.c.l.b16 %v132
    %v429 = vunpack.c.l.b16 %v133
    %v430 = vunpack.c.l.b16 %v134
    %v431 = vunpack.c.l.b16 %v135
    %v432 = vunpack.c.l.b16 %v136
    %v433 = vunpack.c.l.b16 %v137
    %v434 = vunpack.c.l.b16 %v138
    %v435 = vunpack.c.l.b16 %v139
    %v436 = vunpack.c.l.b16 %v140
    %v437 = vunpack.c.l.b16 %v141
    %v438 = vunpack.c.l.b16 %v142
    %v439 = vunpack.c.l.b16 %v143
    %v440 = vunpack.c.l.b16 %v144
    %v441 = vunpack.c.l.b16 %v145
    %v442 = vunpack.c.l.b16 %v146
    %v443 = vunpack.c.l.b16 %v147
    %v444 = vunpack.c.l.b16 %v148
    %v445 = vunpack.c.l.b16 %v149
    %v446 = vunpack.c.l.b16 %v150
    %v447 = vunpack.c.l.b16 %v151
    %v448 = vunpack.c.l.b16 %v152
    %v449 = vunpack.c.l.b16 %v153
    %v450 = vunpack.c.l.b16 %v154
    %v451 = vunpack.c.l.b16 %v155
    %v452 = vunpack.c.l.b16 %v156
    %v453 = vunpack.c.l.b16 %v157
    %v454 = vunpack.c.l.b16 %v158
    %v455 = vunpack.c.l.b16 %v159
    %v456 = vunpack.c.l.b16 %v160
    %v457 = vunpack.c.l.b16 %v161
    %v458 = vunpack.c.l.b16 %v162
    %v459 = vunpack.c.l.b16 %v163
    %v460 = vunpack.c.l.b16 %v164
    %v461 = vunpack.c.l.b16 %v165
    %v462 = vunpack.c.l.b16 %v166
    %v463 = vunpack.c.l.b16 %v167
    %v464 = vunpack.c.l.b16 %v168
    %v465 = vunpack.c.l.b16 %v169
    %v466 = vunpack.c.l.b16 %v170
    %v467 = vunpack.c.l.b16 %v171
    %v468 = vunpack.c.l.b16 %v172
    %v469 = vunpack.c.l.b16 %v173
    %v470 = vunpack.c.l.b16 %v174
    %v471 = vunpack.c.l.b16 %v175
    %v472 = vunpack.c.l.b16 %v176
    %v473 = vunpack.c.l.b16 %v177
    %v474 = vunpack.c.l.b16 %v178
    %v475 = vunpack.c.l.b16 %v179
    %v476 = vunpack.c.l.b16 %v180
    %v477 = vunpack.c.l.b16 %v181
    %v478 = vunpack.c.l.b16 %v182
    %v479 = vunpack.c.l.b16 %v183
    %v480 = vunpack.c.l.b16 %v184
    %v481 = vunpack.c.l.b16 %v185
    %v482 = vunpack.c.l.b16 %v186
    %v483 = vunpack.c.l.b16 %v187
    %v484 = vunpack.c.l.b16 %v188
    %v485 = vunpack.c.l.b16 %v189
    %v486 = vunpack.c.l.b16 %v190
    %v487 = vunpack.c.l.b16 %v191
    %v488 = vunpack.c.l.b16 %v192
    %v489 = vunpack.c.l.b16 %v193
    %v490 = vunpack.c.l.b16 %v194
    %v491 = vunpack.c.l.b16 %v195
    %v492 = vunpack.c.l.b16 %v196
    %v493 = vunpack.c.l.b16 %v197
    %v494 = vunpack.c.l.b16 %v198
    %v495 = vunpack.c.l.b16 %v199
    %v496 = vunpack.c.l.b16 %v200
    %v497 = vunpack.c.l.b16 %v201
    %v498 = vunpack.c.l.b16 %v202
    %v499 = vunpack.c.l.b16 %v203
    %v500 = vunpack.c.l.b16 %v204
    %v501 = vunpack.c.l.b16 %v205
    %v502 = vunpack.c.l.b16 %v206
    %v503 = vunpack.c.l.b16 %v207
    %v504 = vunpack.c.l.b16 %v208
    %v505 = vunpack.c.l.b16 %v209
    %v506 = vunpack.c.l.b16 %v210
    %v507 = vpack.c.b16 %v380, %v379
    %v508 = vpack.c.b16 %v382, %v381
    %v509 = vpack.c.b16 %v384, %v383
    %v510 = vpack.c.b16 %v386, %v385
    %v511 = vpack.c.b16 %v388, %v387
    %v512 = vpack.c.b16 %v390, %v389
    %v513 = vpack.c.b16 %v392, %v391
    %v514 = vpack.c.b16 %v394, %v393
    %v515 = vpack.c.b16 %v396, %v395
    %v516 = vpack.c.b16 %v398, %v397
    %v517 = vpack.c.b16 %v400, %v399
    %v518 = vpack.c.b16 %v402, %v401
    %v519 = vpack.c.b16 %v404, %v403
    %v520 = vpack.c.b16 %v406, %v405
    %v521 = vpack.c.b16 %v408, %v407
    %v522 = vpack.c.b16 %v410, %v409
    %v523 = vpack.c.b16 %v412, %v411
    %v524 = vpack.c.b16 %v414, %v413
    %v525 = vpack.c.b16 %v416, %v415
    %v526 = vpack.c.b16 %v418, %v417
    %v527 = vpack.c.b16 %v420, %v419
    %v528 = vpack.c.b16 %v422, %v421
    %v529 = vpack.c.b16 %v424, %v423
    %v530 = vpack.c.b16 %v426, %v425
    %v531 = vpack.c.b16 %v428, %v427
    %v532 = vpack.c.b16 %v430, %v429
    %v533 = vpack.c.b16 %v432, %v431
    %v534 = vpack.c.b16 %v434, %v433
    %v535 = vpack.c.b16 %v436, %v435
    %v536 = vpack.c.b16 %v438, %v437
    %v537 = vpack.c.b16 %v440, %v439
    %v538 = vpack.c.b16 %v442, %v441
    %v539 = vpack.c.b16 %v444, %v443
    %v540 = vpack.c.b16 %v446, %v445
    %v541 = vpack.c.b16 %v448, %v447
    %v542 = vpack.c.b16 %v450, %v449
    %v543 = vpack.c.b16 %v452, %v451
    %v544 = vpack.c.b16 %v454, %v453
    %v545 = vpack.c.b16 %v456, %v455
    %v546 = vpack.c.b16 %v458, %v457
    %v547 = vpack.c.b16 %v460, %v459
    %v548 = vpack.c.b16 %v462, %v461
    %v549 = vpack.c.b16 %v464, %v463
    %v550 = vpack.c.b16 %v466, %v465
    %v551 = vpack.c.b16 %v468, %v467
    %v552 = vpack.c.b16 %v470, %v469
    %v553 = vpack.c.b16 %v472, %v471
    %v554 = vpack.c.b16 %v474, %v473
    %v555 = vpack.c.b16 %v476, %v475
    %v556 = vpack.c.b16 %v478, %v477
    %v557 = vpack.c.b16 %v480, %v479
    %v558 = vpack.c.b16 %v482, %v481
    %v559 = vpack.c.b16 %v484, %v483
    %v560 = vpack.c.b16 %v486, %v485
    %v561 = vpack.c.b16 %v488, %v487
    %v562 = vpack.c.b16 %v490, %v489
    %v563 = vpack.c.b16 %v492, %v491
    %v564 = vpack.c.b16 %v494, %v493
    %v565 = vpack.c.b16 %v496, %v495
    %v566 = vpack.c.b16 %v498, %v497
    %v567 = vpack.c.b16 %v500, %v499
    %v568 = vpack.c.b16 %v502, %v501
    %v569 = vpack.c.b16 %v504, %v503
    %v570 = vpack.c.b16 %v506, %v505
    %635 = vmatpush.bf16.msra.mxu0 %v514
    %636 = vmatpush.bf16.msra.mxu0 %v513
    %637 = vmatpush.bf16.msra.mxu0 %v512
    %638 = vmatpush.bf16.msra.mxu0 %v511
    %639 = vmatpush.bf16.msra.mxu0 %v510
    %640 = vmatpush.bf16.msra.mxu0 %v509
    %641 = vmatpush.bf16.msra.mxu0 %v508
    %642 = vmatpush.bf16.msra.mxu0 %v507
    %643 = vmatmul.bf16.gmra.mxu0 %v235
    %v644 = vpop.f32.mrf.mxu0
    %v645 = vadd.f32 0.0, %v644
    %v646 = vpop.f32.mrf.mxu0
    %v647 = vadd.f32 0.0, %v646
    %648 = vdwg.mxu0
    %649 = vmatpush.bf16.msra.mxu0 %v522
    %650 = vmatpush.bf16.msra.mxu0 %v521
    %651 = vmatpush.bf16.msra.mxu0 %v520
    %652 = vmatpush.bf16.msra.mxu0 %v519
    %653 = vmatpush.bf16.msra.mxu0 %v518
    %654 = vmatpush.bf16.msra.mxu0 %v517
    %655 = vmatpush.bf16.msra.mxu0 %v516
    %656 = vmatpush.bf16.msra.mxu0 %v515
    %657 = vmatmul.bf16.gmra.mxu0 %v236
    %v658 = vpop.f32.mrf.mxu0
    %v659 = vadd.f32 %v645, %v658
    %v660 = vpop.f32.mrf.mxu0
    %v661 = vadd.f32 %v647, %v660
    %662 = vdwg.mxu0
    %663 = vmatpush.bf16.msra.mxu0 %v530
    %664 = vmatpush.bf16.msra.mxu0 %v529
    %665 = vmatpush.bf16.msra.mxu0 %v528
    %666 = vmatpush.bf16.msra.mxu0 %v527
    %667 = vmatpush.bf16.msra.mxu0 %v526
    %668 = vmatpush.bf16.msra.mxu0 %v525
    %669 = vmatpush.bf16.msra.mxu0 %v524
    %670 = vmatpush.bf16.msra.mxu0 %v523
    %671 = vmatmul.bf16.gmra.mxu0 %v237
    %v672 = vpop.f32.mrf.mxu0
    %v673 = vadd.f32 %v659, %v672
    %v674 = vpop.f32.mrf.mxu0
    %v675 = vadd.f32 %v661, %v674
    %676 = vdwg.mxu0
    %677 = vmatpush.bf16.msra.mxu0 %v538
    %678 = vmatpush.bf16.msra.mxu0 %v537
    %679 = vmatpush.bf16.msra.mxu0 %v536
    %680 = vmatpush.bf16.msra.mxu0 %v535
    %681 = vmatpush.bf16.msra.mxu0 %v534
    %682 = vmatpush.bf16.msra.mxu0 %v533
    %683 = vmatpush.bf16.msra.mxu0 %v532
    %684 = vmatpush.bf16.msra.mxu0 %v531
    %685 = vmatmul.bf16.gmra.mxu0 %v238
    %v686 = vpop.f32.mrf.mxu0
    %v687 = vadd.f32 %v673, %v686
    %v688 = vpop.f32.mrf.mxu0
    %v689 = vadd.f32 %v675, %v688
    %690 = vdwg.mxu0
    %691 = vmatpush.bf16.msra.mxu0 %v546
    %692 = vmatpush.bf16.msra.mxu0 %v545
    %693 = vmatpush.bf16.msra.mxu0 %v544
    %694 = vmatpush.bf16.msra.mxu0 %v543
    %695 = vmatpush.bf16.msra.mxu0 %v542
    %696 = vmatpush.bf16.msra.mxu0 %v541
    %697 = vmatpush.bf16.msra.mxu0 %v540
    %698 = vmatpush.bf16.msra.mxu0 %v539
    %699 = vmatmul.bf16.gmra.mxu0 %v239
    %v700 = vpop.f32.mrf.mxu0
    %v701 = vadd.f32 %v687, %v700
    %v702 = vpop.f32.mrf.mxu0
    %v703 = vadd.f32 %v689, %v702
    %704 = vdwg.mxu0
    %705 = vmatpush.bf16.msra.mxu0 %v554
    %706 = vmatpush.bf16.msra.mxu0 %v553
    %707 = vmatpush.bf16.msra.mxu0 %v552
    %708 = vmatpush.bf16.msra.mxu0 %v551
    %709 = vmatpush.bf16.msra.mxu0 %v550
    %710 = vmatpush.bf16.msra.mxu0 %v549
    %711 = vmatpush.bf16.msra.mxu0 %v548
    %712 = vmatpush.bf16.msra.mxu0 %v547
    %713 = vmatmul.bf16.gmra.mxu0 %v240
    %v714 = vpop.f32.mrf.mxu0
    %v715 = vadd.f32 %v701, %v714
    %v716 = vpop.f32.mrf.mxu0
    %v717 = vadd.f32 %v703, %v716
    %718 = vdwg.mxu0
    %719 = vmatpush.bf16.msra.mxu0 %v562
    %720 = vmatpush.bf16.msra.mxu0 %v561
    %721 = vmatpush.bf16.msra.mxu0 %v560
    %722 = vmatpush.bf16.msra.mxu0 %v559
    %723 = vmatpush.bf16.msra.mxu0 %v558
    %724 = vmatpush.bf16.msra.mxu0 %v557
    %725 = vmatpush.bf16.msra.mxu0 %v556
    %726 = vmatpush.bf16.msra.mxu0 %v555
    %727 = vmatmul.bf16.gmra.mxu0 %v241
    %v728 = vpop.f32.mrf.mxu0
    %v729 = vadd.f32 %v715, %v728
    %v730 = vpop.f32.mrf.mxu0
    %v731 = vadd.f32 %v717, %v730
    %732 = vdwg.mxu0
    %733 = vmatpush.bf16.msra.mxu0 %v570
    %734 = vmatpush.bf16.msra.mxu0 %v569
    %735 = vmatpush.bf16.msra.mxu0 %v568
    %736 = vmatpush.bf16.msra.mxu0 %v567
    %737 = vmatpush.bf16.msra.mxu0 %v566
    %738 = vmatpush.bf16.msra.mxu0 %v565
    %739 = vmatpush.bf16.msra.mxu0 %v564
    %740 = vmatpush.bf16.msra.mxu0 %v563
    %741 = vmatmul.bf16.gmra.mxu0 %v242
    %v742 = vpop.f32.mrf.mxu0
    %v743 = vadd.f32 %v729, %v742
    %v744 = vpop.f32.mrf.mxu0
    %v745 = vadd.f32 %v731, %v744
    %746 = vdwg.mxu0
    %v747 = vadd.f32 %v73, %v743
    %v748 = vadd.f32 %v74, %v745
    %749 = vst [vmem:[%s3] sm:$0xff] %v747
    %750 = vst [vmem:[%s3 + $0x8] sm:$0xff] %v748
    // Predicated region
    $region22: #{predict.1} parent=1 // pred_check
      _
    $region23: #{predict.1} parent=1 // pred_check_branch
      %752 = sbr.rel (0) target = $region25
    $region24: #{predict.1} parent=1 // pred_region
      _
    $region25: #{predict.1} parent=1 // pred_fallthru
      _
    // Predicated region
    $region26: #{predict.1} parent=1 // pred_check
      _
    $region27: #{predict.1} parent=1 // pred_check_branch
      %754 = sbr.rel (0) target = $region29
    $region28: #{predict.1} parent=1 // pred_region
      _
    $region29: #{predict.1} parent=1 // pred_fallthru
      _
    %755 = vsyncpa [#allocation3], 1

</llo_original>
